<compile_context>
chip_gen: v7x
topology: tpu7x:2x2x1
jax: 0.10.0
libtpu: 0.0.40
codegen_flags: <defaults>
</compile_context>

<pallas_src>
import functools

import numpy as np
import jax
import jax.numpy as jnp
from jax import lax
from jax.experimental import pallas as pl
from jax.experimental.pallas import tpu as pltpu


# ConvTranspose2d(k=4, s=2, p=1) phase decomposition tables: output pixel
# (2p+r, 2q+s) reads padded input rows p+_OFF[r][a] with transposed-kernel
# index _KIDX[r][a] (same for columns).
_OFF = ((0, 1), (1, 2))
_KIDX = ((3, 1), (2, 0))


def _probe_roll_direction():
    """One-time probe of pltpu.roll's rotation direction (at import time)."""
    def k(x_ref, o_ref):
        o_ref[...] = pltpu.roll(x_ref[...], 1, 1)

    x = jnp.broadcast_to(jnp.arange(128, dtype=jnp.float32)[None, :], (8, 128))
    y = pl.pallas_call(
        k, out_shape=jax.ShapeDtypeStruct((8, 128), jnp.float32))(x)
    # np.roll semantics: y[0,0] == x[0,-1] == 127
    return bool(float(np.asarray(y)[0, 0]) == 127.0)


_ROLL_NP = _probe_roll_direction()


def _shift_masks(B, H, W):
    """mask[(dh+1)*3+(dw+1), b*H*W + h*W + w] = 1 iff (h+dh, w+dw) in-bounds."""
    N = B * H * W
    hh = np.arange(H).reshape(H, 1)
    ww = np.arange(W).reshape(1, W)
    m = np.zeros((9, N), np.float32)
    for dh in (-1, 0, 1):
        for dw in (-1, 0, 1):
            valid = ((hh + dh >= 0) & (hh + dh < H) &
                     (ww + dw >= 0) & (ww + dw < W)).astype(np.float32)
            m[(dh + 1) * 3 + (dw + 1), :] = np.tile(valid.reshape(-1), B)
    return jnp.asarray(m)


# --------------------------------------------------------------------------
# Fused whole-network kernel
# --------------------------------------------------------------------------

def _generator_kernel(
    x_ref, mask_ref, jw_ref, rw_ref, uw_ref, iw_ref, vec_ref,
    out_ref, img_ref,
    *, L, C, HP, W, N, roll_np, eps):
    """Activations are (channels, B*H*W): channels on sublanes, pixels on lanes."""

    # ---- hoist boundary masks once (broadcast to activation row count) ----
    m_all = mask_ref[...]                                  # (9, N)

    def make_masks(rows):
        d = {}
        for dh in (-1, 0, 1):
            for dw in (-1, 0, 1):
                if dh == 0 and dw == 0:
                    continue
                k = (dh + 1) * 3 + (dw + 1)
                d[(dh, dw)] = jnp.broadcast_to(m_all[k:k + 1, :], (rows, N))
        return d

    msk_c = make_masks(C)
    msk_u = msk_c if HP == C else make_masks(HP)

    def shifted(x, dh, dw, msk):
        # y[c, (b,h,w)] = x[c, (b, h+dh, w+dw)]  (0 outside the image)
        if dh == 0 and dw == 0:
            return x
        s = dh * W + dw
        amt = ((-s) % N) if roll_np else (s % N)
        return pltpu.roll(x, amt, 1) * msk[(dh, dw)]       # XLU roll + VALU mask

    def taps9(x):
        # all 9 shifted copies, tap order t = (dh+1)*3 + (dw+1)
        return [shifted(x, dh, dw, msk_c)
                for dh in (-1, 0, 1) for dw in (-1, 0, 1)]

    def bn(x, g, b, n, relu):
        # one-pass training-mode BatchNorm2d fused with affine (+ ReLU)
        s1 = jnp.sum(x, axis=1, keepdims=True)
        s2 = jnp.sum(x * x, axis=1, keepdims=True)
        mean = s1 * (1.0 / n)
        var = s2 * (1.0 / n) - mean * mean
        scale = g * lax.rsqrt(var + eps)
        shift = b - mean * scale
        y = x * scale + shift
        return jnp.maximum(y, 0.0) if relu else y

    # ---- joining layer: 1x1 conv (bias cancelled by BN) -> BN -> ReLU -----
    x = jnp.dot(jw_ref[...], x_ref[...], preferred_element_type=jnp.float32)
    x = bn(x, vec_ref[0:C, 0:1], vec_ref[0:C, 1:2], float(N), True)

    # ---- residual blocks: x + BN(conv(ReLU(BN(conv(x))))) -----------------
    # TODO(synk): for large num_res_layer switch to lax.fori_loop + pl.ds
    # weight indexing to bound code size / vreg live ranges.
    for l in range(L):
        v = 2 + 4 * l
        h = jnp.dot(rw_ref[2 * l], jnp.concatenate(taps9(x), axis=0),
                    preferred_element_type=jnp.float32)
        h = bn(h, vec_ref[0:C, v:v + 1], vec_ref[0:C, v + 1:v + 2],
               float(N), True)
        h = jnp.dot(rw_ref[2 * l + 1], jnp.concatenate(taps9(h), axis=0),
                    preferred_element_type=jnp.float32)
        x = x + bn(h, vec_ref[0:C, v + 2:v + 3], vec_ref[0:C, v + 3:v + 4],
                   float(N), False)

    cu = 2 + 4 * L

    # ---- ConvTranspose2d(4, stride=2, pad=1): 4 phases in ONE matmul ------
    im9 = jnp.concatenate(taps9(x), axis=0)                 # (9C, N), dedup'd taps
    raw = jnp.dot(uw_ref[...], im9,
                  preferred_element_type=jnp.float32)       # (4*HP, N)

    # pooled one-pass BN stats over the 4 phases (per half-channel)
    s1 = jnp.sum(raw, axis=1, keepdims=True)                # (4*HP, 1)
    s2 = jnp.sum(raw * raw, axis=1, keepdims=True)
    s1c = s1[0:HP] + s1[HP:2 * HP] + s1[2 * HP:3 * HP] + s1[3 * HP:4 * HP]
    s2c = s2[0:HP] + s2[HP:2 * HP] + s2[2 * HP:3 * HP] + s2[3 * HP:4 * HP]
    n_up = 4.0 * N
    mean = s1c * (1.0 / n_up)
    var = s2c * (1.0 / n_up) - mean * mean
    scale = vec_ref[0:HP, cu:cu + 1] * lax.rsqrt(var + eps)   # zero on pad rows
    shift = vec_ref[0:HP, cu + 1:cu + 2] - mean * scale
    scale4 = jnp.concatenate([scale] * 4, axis=0)           # (4*HP, 1)
    shift4 = jnp.concatenate([shift] * 4, axis=0)
    up_all = jnp.maximum(raw * scale4 + shift4, 0.0)        # (4*HP, N)
    out_ref[...] = up_all                                   # full-tile store

    # ---- image extractor: 3x3 conv on the 2Hx2W image + tanh --------------
    up = [up_all[p * HP:(p + 1) * HP, :] for p in range(4)]
    row_keys = sorted({divmod(r + kh - 1, 2)
                       for r in range(2) for kh in range(3)})
    col_keys = sorted({divmod(s + kw - 1, 2)
                       for s in range(2) for kw in range(3)})
    ups = {}                                                # 16 unique taps
    for dp, rp in row_keys:
        for dq, sp in col_keys:
            ups[(dp, rp, dq, sp)] = shifted(up[rp * 2 + sp], dp, dq, msk_u)

    ims = []
    for r in range(2):
        for s in range(2):
            cols = []
            for kh in range(3):
                dp, rp = divmod(r + kh - 1, 2)
                for kw in range(3):
                    dq, sp = divmod(s + kw - 1, 2)
                    cols.append(ups[(dp, rp, dq, sp)])
            ims.append(jnp.concatenate(cols, axis=0))       # (9*HP, N)
    im_all = jnp.concatenate(ims, axis=1)                   # (9*HP, 4*N)
    y = jnp.dot(iw_ref[...], im_all,
                preferred_element_type=jnp.float32)         # (8, 4*N)
    img_ref[...] = jnp.tanh(y + vec_ref[0:8, cu + 2:cu + 3])


# --------------------------------------------------------------------------
# Parameters & forward pass (Generator_type_2)
# --------------------------------------------------------------------------

def init_params(key, in_chans, condition_dim, num_res_layer):
    C, half = in_chans, in_chans // 2
    keys = iter(jax.random.split(key, 64))

    def w(shape, scale=0.1):
        return jax.random.normal(next(keys), shape, jnp.float32) * scale

    params = {
        "join_w": w((C, condition_dim + C, 1, 1)), "join_b": w((C,)),
        "join_gamma": 1.0 + w((C,), 0.05), "join_beta": w((C,), 0.05),
        "res": [],
        "up_w": w((C, half, 4, 4)), "up_b": w((half,)),
        "up_gamma": 1.0 + w((half,), 0.05), "up_beta": w((half,), 0.05),
        "img_w": w((3, half, 3, 3)), "img_b": w((3,)),
    }
    for _ in range(num_res_layer):
        params["res"].append({
            "w1": w((C, C, 3, 3)), "b1": w((C,)),
            "g1": 1.0 + w((C,), 0.05), "be1": w((C,), 0.05),
            "w2": w((C, C, 3, 3)), "b2": w((C,)),
            "g2": 1.0 + w((C,), 0.05), "be2": w((C,), 0.05),
        })
    return params


def generator_type_2_forward(params, condition, prev_output):
    """condition: [B, condition_dim]; prev_output: [B, C, H, W] (NCHW)."""
    B, C, H, W = prev_output.shape
    cond_dim = condition.shape[1]
    half = C // 2
    HP = ((half + 7) // 8) * 8          # pad upsample channels to a sublane tile
    N = B * H * W
    assert C % 8 == 0, "in_chans must be a multiple of 8 for this kernel"
    # TODO(synk): generalize channel zero-padding for in_chans not a multiple of 8.

    L = len(params["res"])
    maxC = max(C, HP, 8)

    # ---- input prep: channels on sublanes, B*H*W pixels on lanes ----------
    xprev = jnp.transpose(prev_output, (1, 0, 2, 3)).reshape(C, N)
    condb = jnp.broadcast_to(condition.T[:, :, None],
                             (cond_dim, B, H * W)).reshape(cond_dim, N)
    x_in = jnp.concatenate([condb, xprev], axis=0)          # (cond_dim + C, N)

    # ---- weight prep (tiny, once per trace) --------------------------------
    # NOTE: join_b / res b1,b2 / up_b are NOT passed — they feed training-mode
    # BatchNorm and cancel exactly (mean shift, variance unchanged).
    jw = params["join_w"].reshape(C, cond_dim + C)

    def conv_w(w):     # [Cout, Cin, 3, 3] -> [Cout, 9*Cin] (im2col tap order)
        co, ci = w.shape[0], w.shape[1]
        return jnp.transpose(w, (0, 2, 3, 1)).reshape(co, 9 * ci)

    rw = jnp.stack([conv_w(rp[k]) for rp in params["res"]
                    for k in ("w1", "w2")])                 # (2L, C, 9C)

    # deconv big weight (4*HP, 9*C): each phase's 4 taps embedded (zeros
    # elsewhere) so the 4 phases share one 9-tap im2col and one matmul.
    wpt = params["up_w"]                                    # (C, half, 4, 4)
    uw_big = jnp.zeros((4 * HP, 9 * C), jnp.float32)
    for r in range(2):
        for s in range(2):
            p = r * 2 + s
            for a in range(2):
                dh = _OFF[r][a] - 1
                for c_ in range(2):
                    dw = _OFF[s][c_] - 1
                    t = (dh + 1) * 3 + (dw + 1)
                    blk = jnp.transpose(
                        wpt[:, :, _KIDX[r][a], _KIDX[s][c_]], (1, 0))  # (half, C)
                    uw_big = uw_big.at[p * HP:p * HP + half,
                                       t * C:(t + 1) * C].set(blk)

    iw = jnp.transpose(params["img_w"], (0, 2, 3, 1))       # (3, 3, 3, half)
    iw = jnp.pad(iw, ((0, 0), (0, 0), (0, 0), (0, HP - half))).reshape(3, 9 * HP)
    iw = jnp.pad(iw, ((0, 8 - 3), (0, 0)))                  # (8, 9*HP)

    # per-channel affine vectors packed into one (maxC, NV) table
    def col(v):
        v = jnp.asarray(v, jnp.float32).reshape(-1)
        return jnp.pad(v, (0, maxC - v.shape[0]))           # zero-pad rows

    vec_cols = [col(params["join_gamma"]), col(params["join_beta"])]
    for rp in params["res"]:
        vec_cols += [col(rp["g1"]), col(rp["be1"]),
                     col(rp["g2"]), col(rp["be2"])]
    vec_cols += [col(params["up_gamma"]), col(params["up_beta"]),
                 col(params["img_b"])]
    vec = jnp.stack(vec_cols, axis=1)                       # (maxC, 5 + 4L)

    masks = _shift_masks(B, H, W)                           # (9, N)

    kern = functools.partial(
        _generator_kernel, L=L, C=C, HP=HP, W=W, N=N,
        roll_np=_ROLL_NP, eps=1e-5)

    args = (x_in, masks, jw, rw, uw_big, iw, vec)
    vmem = pl.BlockSpec(memory_space=pltpu.MemorySpace.VMEM)

    out_slab, img_slab = pl.pallas_call(
        kern,
        out_shape=(jax.ShapeDtypeStruct((4 * HP, N), jnp.float32),
                   jax.ShapeDtypeStruct((8, 4 * N), jnp.float32)),
        in_specs=[vmem] * len(args),
        out_specs=(vmem, vmem),
    )(*args)

    # ---- phase -> NCHW interleave on the tiny outputs ----------------------
    t = out_slab.reshape(2, 2, HP, B, H, W)[:, :, :half]    # (r,s,c,b,h,w)
    out = jnp.transpose(t, (3, 2, 4, 0, 5, 1)).reshape(B, half, 2 * H, 2 * W)

    ti = img_slab[:3].reshape(3, 2, 2, B, H, W)             # (c,r,s,b,h,w)
    out_image = jnp.transpose(ti, (3, 0, 4, 1, 5, 2)).reshape(B, 3, 2 * H, 2 * W)
    return out, out_image


# --------------------------------------------------------------------------
# Pure-JAX reference (for verification only; keeps the PyTorch biases)
# --------------------------------------------------------------------------

def _conv_ref(x, w_pt, b, pad):
    out = lax.conv_general_dilated(x, w_pt, (1, 1), [(pad, pad), (pad, pad)],
                                   dimension_numbers=('NHWC', 'OIHW', 'NHWC'))
    return out + b


def _deconv_ref(x, w_pt, b):
    w = jnp.transpose(jnp.flip(w_pt, axis=(2, 3)), (1, 0, 2, 3))
    out = lax.conv_general_dilated(x, w, (1, 1), [(2, 2), (2, 2)],
                                   lhs_dilation=(2, 2),
                                   dimension_numbers=('NHWC', 'OIHW', 'NHWC'))
    return out + b


def _bn_ref(x, g, be, relu, residual=None, eps=1e-5):
    mean = jnp.mean(x, axis=(0, 1, 2))
    var = jnp.mean(jnp.square(x - mean), axis=(0, 1, 2))
    y = (x - mean) / jnp.sqrt(var + eps) * g + be
    if residual is not None:
        y = y + residual
    return jnp.maximum(y, 0.0) if relu else y


def reference_forward(params, condition, prev_output_nchw):
    B, C, H, W = prev_output_nchw.shape
    x = jnp.transpose(prev_output_nchw, (0, 2, 3, 1))
    cond = jnp.broadcast_to(condition[:, None, None, :],
                            (B, H, W, condition.shape[1]))
    out = jnp.concatenate([cond, x], axis=-1)
    out = _bn_ref(_conv_ref(out, params["join_w"], params["join_b"], 0),
                  params["join_gamma"], params["join_beta"], True)
    for rp in params["res"]:
        h = _bn_ref(_conv_ref(out, rp["w1"], rp["b1"], 1), rp["g1"], rp["be1"], True)
        out = _bn_ref(_conv_ref(h, rp["w2"], rp["b2"], 1), rp["g2"], rp["be2"],
                      False, residual=out)
    out = _bn_ref(_deconv_ref(out, params["up_w"], params["up_b"]),
                  params["up_gamma"], params["up_beta"], True)
    out_image = jnp.tanh(_conv_ref(out, params["img_w"], params["img_b"], 1))
    return (jnp.transpose(out, (0, 3, 1, 2)),
            jnp.transpose(out_image, (0, 3, 1, 2)))


# --------------------------------------------------------------------------

if __name__ == "__main__":
    key = jax.random.PRNGKey(0)
    B, C, H, W = 2, 8, 8, 8
    condition_dim, num_res_layer = 8, 2

    kp, kc, kx = jax.random.split(key, 3)
    params = init_params(kp, C, condition_dim, num_res_layer)
    condition = jax.random.normal(kc, (B, condition_dim), jnp.float32)
    prev_output = jax.random.normal(kx, (B, C, H, W), jnp.float32)

    fwd = jax.jit(generator_type_2_forward)
    out, out_image = fwd(params, condition, prev_output)
    jax.block_until_ready((out, out_image))

    assert out.shape == (B, C // 2, 2 * H, 2 * W)
    assert out_image.shape == (B, 3, 2 * H, 2 * W)

    ref_out, ref_img = reference_forward(params, condition, prev_output)
    np.testing.assert_allclose(np.asarray(out), np.asarray(ref_out),
                               atol=2e-3, rtol=2e-3)
    np.testing.assert_allclose(np.asarray(out_image), np.asarray(ref_img),
                               atol=2e-3, rtol=2e-3)

    print("KERNEL_OK")
</pallas_src>

<mosaic_0001>
module attributes {stable_mosaic.version = 11 : i64} {
  func.func @k(%arg0: memref<8x128xf32, #tpu.memory_space<vmem>>, %arg1: memref<8x128xf32, #tpu.memory_space<vmem>>) attributes {dimension_semantics = [], scalar_prefetch = 0 : i64, scratch_operands = 0 : i64, tpu.core_type = #tpu.core_type<tc>} {
    %c0 = arith.constant 0 : index
    %c0_0 = arith.constant 0 : index
    %0 = vector.load %arg0[%c0, %c0_0] : memref<8x128xf32, #tpu.memory_space<vmem>>, vector<8x128xf32>
    %c1_i32 = arith.constant 1 : i32
    %1 = tpu.dynamic_rotate %0 by %c1_i32 dim 1 : vector<8x128xf32>, i32 -> vector<8x128xf32>
    %c0_1 = arith.constant 0 : index
    %c0_2 = arith.constant 0 : index
    %2 = vector.load %arg1[%c0_1, %c0_2] : memref<8x128xf32, #tpu.memory_space<vmem>>, vector<8x128xf32>
    tpu.vector_store %arg1[%c0_1, %c0_2], %1 {strides = array<i32>} : memref<8x128xf32, #tpu.memory_space<vmem>>, vector<8x128xf32>,
    return
  }
}

</mosaic_0001>

<llo_original>
// kernel: tpu_custom_call.1
$region0: #{tpu_custom_call.1}
  #allocation0 [shape = 'u32[]', space=smem, size = 0x4, offset = 0x4, fixed_abs, tag = 'smem constant byte address 0x4 - core index']
  #allocation1 [shape = 'u32[144,128]{1,0:T(1,128)}', space=vmem, size = 0x12000, scoped, tag = 'internal scratch']
  %s0 = inlined_call_operand.hbm [shape: f32[8,128], index: 0, kind: input, shape index: {}]
  %s1 = inlined_call_operand.hbm [shape: f32[8,128], index: 1, kind: output, shape index: {}]
  %s2 = sld [smem:[#allocation0]]
  $region18: #{tpu_custom_call.1} parent=0
    _
  %s4 = ssub.s32 1, %s2
  %s5 = scalar_select 0, %s4, %s2
  $region1: #{tpu_custom_call.1} parent=0
    #allocation2 [shape = 'u8[4096]{0}', space=vmem, size = 0x1000, scoped, tag = 'input window, operand 0, single buffered']
    #allocation3 [shape = 's32[1]{0}', space=sflag, size = 0x4, scoped, tag = 'scoped memory for tpu_custom_call.1']
    #allocation4 [shape = 's32[1]{0}', space=sflag, size = 0x4, scoped, tag = 'scoped memory for tpu_custom_call.1']
    #allocation5 [shape = 'u8[4096]{0}', space=vmem, size = 0x1000, scoped, tag = 'output window, operand 0, single buffered']
    %6 = vsyncpa [#allocation3], 0
    %7 = vsyncpa [#allocation4], 0
    // Predicated region
    $region2: #{tpu_custom_call.1} parent=1 // pred_check
      _
    $region3: #{tpu_custom_call.1} parent=1 // pred_check_branch
      %9 = sbr.rel (0) target = $region5
    $region4: #{tpu_custom_call.1} parent=1 // pred_region
      %s11 = ssub.s32 128, 128
      %12 = vsyncadd [#allocation3], %s11
      %s14 = sshll.u32 [#allocation2], 4
      %s15 = int_to_ptr.vmem [resolvable:$true] %s14
      %17 = dma.hbm_to_vmem [thread:$0]  %s0, 128, %s15, [#allocation3]
    $region5: #{tpu_custom_call.1} parent=1 // pred_fallthru
      _
    // Predicated region
    $region6: #{tpu_custom_call.1} parent=1 // pred_check
      _
    $region7: #{tpu_custom_call.1} parent=1 // pred_check_branch
      %19 = sbr.rel (0) target = $region9
    $region8: #{tpu_custom_call.1} parent=1 // pred_region
      %20 = dma.done [#allocation3], 128
    $region9: #{tpu_custom_call.1} parent=1 // pred_fallthru
      _
    %v21 = vld [vmem:[#allocation2] sm:$0xff]
    %22 = vrot.lane.b32.xlu0 %v21, 1
    %v23 = vpop.permute.xlu0 %22
    %24 = vst [vmem:[#allocation5] sm:$0xff] %v23
    // Predicated region
    $region10: #{tpu_custom_call.1} parent=1 // pred_check
      _
    $region11: #{tpu_custom_call.1} parent=1 // pred_check_branch
      %26 = sbr.rel (0) target = $region13
    $region12: #{tpu_custom_call.1} parent=1 // pred_region
      %s28 = ssub.s32 128, 128
      %29 = vsyncadd [#allocation4], %s28
      %s31 = sshll.u32 [#allocation5], 4
      %s32 = int_to_ptr.vmem [resolvable:$true] %s31
      %34 = dma.vmem_to_hbm [thread:$0]  %s32, 128, %s1, [#allocation4]
    $region13: #{tpu_custom_call.1} parent=1 // pred_fallthru
      _
    // Predicated region
    $region14: #{tpu_custom_call.1} parent=1 // pred_check
      _
    $region15: #{tpu_custom_call.1} parent=1 // pred_check_branch
      %36 = sbr.rel (0) target = $region17
    $region16: #{tpu_custom_call.1} parent=1 // pred_region
      %37 = dma.done [#allocation4], 128
    $region17: #{tpu_custom_call.1} parent=1 // pred_fallthru
      _
    %38 = vsyncpa [#allocation3], 1
    %39 = vsyncpa [#allocation4], 1

</llo_original>
